<compile_context>
chip_gen: v6e
topology: v6e:2x2x1
jax: 0.10.0
libtpu: 0.0.40
codegen_flags: <defaults>
</compile_context>

<pallas_src>
import functools

import jax
import jax.numpy as jnp
from jax.experimental import pallas as pl
from jax.experimental.pallas import tpu as pltpu

LANE = 128


def _round_up(x, m):
    return (x + m - 1) // m * m


def _choose_tile(dim, target, step=LANE):
    """Largest multiple of `step` that divides `dim` and is <= max(step, target)."""
    t = max(step, min(target, dim) // step * step)
    while dim % t:
        t -= step
    return t


def _pad2(a, rows, cols):
    out = jnp.zeros((rows, cols), a.dtype)
    return out.at[: a.shape[0], : a.shape[1]].set(a)


@functools.lru_cache(maxsize=1)
def _vmem_capacity_bytes():
    """Physical VMEM of the local TPU generation (v5e/v6e 128 MiB, v7x 64 MiB)."""
    try:
        cap = int(getattr(pltpu.get_tpu_info(), "vmem_capacity_bytes", 0))
        if cap > 0:
            return cap
    except Exception:
        pass
    return 64 * 1024 * 1024  # conservative (v7x-sized) fallback


def _vmem_need_bytes(tm, tk, bn_pad, h_pad, ff_pad, out_pad, xw_resident):
    """Rough VMEM footprint of the kernel for a given tiling."""
    a_tiles = 2 * tm * tk * 2                                   # bf16, 2 buffers
    xw = (2 * bn_pad * h_pad * 2) if xw_resident else (2 * tk * h_pad * 2)
    weights = 2 * (h_pad * ff_pad + ff_pad * out_pad) * 2        # bf16, 2 buffers
    biases = 2 * (h_pad + ff_pad + out_pad) * 4
    acc = tm * h_pad * 4
    out = 2 * tm * out_pad * 4
    return a_tiles + xw + weights + biases + acc + out


# ---------------------------------------------------------------------------
# Kernel: tiled A_hat @ XW accumulation with fused GCN-bias + MLP epilogue.
# grid = (BN_pad // TM, BN_pad // TK); axis 0 = rows (parallel), axis 1 = k.
# ---------------------------------------------------------------------------
def st_backbone_kernel(a_ref, xw_ref, bg_ref, w1_ref, b1_ref, w2_ref, b2_ref,
                       out_ref, acc_ref, *, k_tile, xw_resident):
    k = pl.program_id(1)

    @pl.when(k == 0)
    def _init():
        acc_ref[...] = jnp.zeros_like(acc_ref)

    # GCN aggregation: accumulate A_hat[i, k] @ XW[k]  (bf16 in, f32 acc).
    if xw_resident:
        # XW is resident in VMEM for the whole grid; slice the k-chunk here
        # instead of re-streaming it from HBM once per row tile.
        off = pl.multiple_of(k * k_tile, LANE)
        xw = xw_ref[pl.ds(off, k_tile), :]
    else:
        xw = xw_ref[...]
    acc_ref[...] += jnp.dot(a_ref[...], xw, preferred_element_type=jnp.float32)

    @pl.when(k == pl.num_programs(1) - 1)
    def _epilogue():
        # GCN bias added once at finalization, then per-timestep MLP backbone.
        # NOTE: rows beyond the real b*n are zero padding; they produce
        # gelu(bg@W1+b1)@W2+b2 garbage here and are sliced off in the wrapper.
        # That is intentional -- do not "fix" it.
        h = acc_ref[...] + bg_ref[...]
        # TODO(synk): PyTorch nn.GELU defaults to exact erf; the tanh
        # approximation is used here (Mosaic-native), consistent with the
        # pure-JAX reference below.
        t = jax.nn.gelu(
            jnp.dot(h.astype(jnp.bfloat16), w1_ref[...],
                    preferred_element_type=jnp.float32) + b1_ref[...])
        out_ref[...] = (
            jnp.dot(t.astype(jnp.bfloat16), w2_ref[...],
                    preferred_element_type=jnp.float32)
            + b2_ref[...]).astype(out_ref.dtype)


# ---------------------------------------------------------------------------
# Static-graph preprocessing (ONCE per graph, outside the hot path).
# ---------------------------------------------------------------------------
def prepare_adjacency(adj):
    """Mirrors _convert_to_edge_index(add_self_loop=True) + GCNConv symmetric
    normalization; emitted lane-padded in bf16 for the kernel."""
    # TODO(synk): torch.nonzero -> ragged edge_index has no clean Pallas
    # equivalent; the static graph is kept dense instead.
    bn = adj.shape[0]
    a = (adj != 0).astype(jnp.float32)
    a = jnp.minimum(a + jnp.eye(bn, dtype=jnp.float32), 1.0)
    dinv = jax.lax.rsqrt(a.sum(axis=1))
    a_hat = a * dinv[:, None] * dinv[None, :]
    bn_pad = _round_up(bn, LANE)
    return _pad2(a_hat.astype(jnp.bfloat16), bn_pad, bn_pad)


def prepare_params(params):
    """Zero-pad channel dims to the 128-lane width; MLP weights in bf16."""
    wg, bg, w1, b1, w2, b2 = params
    h_pad = _round_up(w1.shape[0], LANE)
    ff_pad = _round_up(w1.shape[1], LANE)
    out_pad = _round_up(w2.shape[1], LANE)
    return (
        _pad2(wg, wg.shape[0], h_pad),                          # GCN W  (d, H_pad) f32
        _pad2(bg, 1, h_pad),                                    # GCN b  (1, H_pad) f32
        _pad2(w1.astype(jnp.bfloat16), h_pad, ff_pad),          # MLP W1 bf16
        _pad2(b1, 1, ff_pad),                                   # MLP b1 f32
        _pad2(w2.astype(jnp.bfloat16), ff_pad, out_pad),        # MLP W2 bf16
        _pad2(b2, 1, out_pad),                                  # MLP b2 f32
    )


# ---------------------------------------------------------------------------
# Forward pass (per-step hot path).
# ---------------------------------------------------------------------------
@functools.partial(
    jax.jit, static_argnames=("out_c", "row_tile", "k_tile", "xw_resident"))
def st_backbone_forward(x, a_hat_pad, padded_params, out_c,
                        row_tile=512, k_tile=2048, xw_resident=None):
    """x: (B, N, D) f32; a_hat_pad: (BN_pad, BN_pad) bf16 -> (B, N, out_c)."""
    b, n, d = x.shape
    bn = b * n
    bn_pad = a_hat_pad.shape[0]
    wg_p, bg_p, w1_p, b1_p, w2_p, b2_p = padded_params
    h_pad, ff_pad, out_pad = wg_p.shape[1], w1_p.shape[1], w2_p.shape[1]

    # Hoisted GCN feature transform: X @ Wg done ONCE (K=d is tiny), bf16 out.
    x2 = x.reshape(bn, d)                                   # == x.view(b*n, d)
    xw = jnp.dot(x2, wg_p, preferred_element_type=jnp.float32)
    xw_pad = _pad2(xw.astype(jnp.bfloat16), bn_pad, h_pad)

    # Generation-aware VMEM budget: v5e/v6e (128 MiB) -> 96 MiB, v7x -> 48 MiB.
    vmem_cap = _vmem_capacity_bytes()
    vmem_limit = (vmem_cap * 3) // 4
    budget = (vmem_limit * 4) // 5

    # Keep XW resident in VMEM (grid-invariant BlockSpec) unless too large.
    if xw_resident is None:
        xw_resident = (2 * bn_pad * h_pad * 2) <= vmem_limit // 4

    # Large default tiles; shrink k first, then rows, only if VMEM demands it.
    tm = _choose_tile(bn_pad, row_tile)
    tk = _choose_tile(bn_pad, k_tile)
    while (_vmem_need_bytes(tm, tk, bn_pad, h_pad, ff_pad, out_pad, xw_resident)
           > budget and tk > LANE):
        tk = _choose_tile(bn_pad, max(LANE, tk // 2))
    while (_vmem_need_bytes(tm, tk, bn_pad, h_pad, ff_pad, out_pad, xw_resident)
           > budget and tm > LANE):
        tm = _choose_tile(bn_pad, max(LANE, tm // 2))
    grid = (bn_pad // tm, bn_pad // tk)

    # Advisory scheduling hints for XLA around the custom call.
    flops = (2 * bn_pad * bn_pad * h_pad + 2 * bn_pad * h_pad * ff_pad
             + 2 * bn_pad * ff_pad * out_pad)
    xw_reads = 1 if xw_resident else grid[0]
    bytes_accessed = (bn_pad * bn_pad * 2
                      + xw_reads * bn_pad * h_pad * 2
                      + (h_pad * ff_pad + ff_pad * out_pad) * 2
                      + (h_pad + ff_pad + out_pad) * 4
                      + bn_pad * out_pad * 4)
    cost = pl.CostEstimate(flops=flops, transcendentals=bn_pad * ff_pad,
                           bytes_accessed=bytes_accessed)

    if xw_resident:
        xw_spec = pl.BlockSpec((bn_pad, h_pad), lambda i, k: (0, 0))
    else:
        xw_spec = pl.BlockSpec((tk, h_pad), lambda i, k: (k, 0))

    out = pl.pallas_call(
        functools.partial(st_backbone_kernel, k_tile=tk,
                          xw_resident=xw_resident),
        out_shape=jax.ShapeDtypeStruct((bn_pad, out_pad), jnp.float32),
        grid_spec=pltpu.PrefetchScalarGridSpec(
            num_scalar_prefetch=0,
            grid=grid,
            in_specs=[
                pl.BlockSpec((tm, tk), lambda i, k: (i, k)),           # A tile
                xw_spec,                                               # XW
                pl.BlockSpec((1, h_pad), lambda i, k: (0, 0)),         # bg
                pl.BlockSpec((h_pad, ff_pad), lambda i, k: (0, 0)),    # W1
                pl.BlockSpec((1, ff_pad), lambda i, k: (0, 0)),        # b1
                pl.BlockSpec((ff_pad, out_pad), lambda i, k: (0, 0)),  # W2
                pl.BlockSpec((1, out_pad), lambda i, k: (0, 0)),       # b2
            ],
            out_specs=pl.BlockSpec((tm, out_pad), lambda i, k: (i, 0)),
            scratch_shapes=[pltpu.VMEM((tm, h_pad), jnp.float32)],
        ),
        compiler_params=pltpu.CompilerParams(
            dimension_semantics=("parallel", "arbitrary"),
            vmem_limit_bytes=int(vmem_limit)),
        cost_estimate=cost,
    )(a_hat_pad, xw_pad, bg_p, w1_p, b1_p, w2_p, b2_p)

    return out[:bn, :out_c].reshape(b, n, out_c)            # == x.view(b, n, -1)


# ---------------------------------------------------------------------------
# Pure-JAX reference (f32 end-to-end).
# ---------------------------------------------------------------------------
def reference_forward(x, adj, params):
    b, n, d = x.shape
    bn = b * n
    wg, bg, w1, b1, w2, b2 = params
    a = (adj != 0).astype(jnp.float32)
    a = jnp.minimum(a + jnp.eye(bn, dtype=jnp.float32), 1.0)
    dinv = jax.lax.rsqrt(a.sum(axis=1))
    a_hat = a * dinv[:, None] * dinv[None, :]
    h = a_hat @ (x.reshape(bn, d) @ wg) + bg
    t = jax.nn.gelu(h @ w1 + b1)
    return (t @ w2 + b2).reshape(b, n, -1)


if __name__ == "__main__":
    key = jax.random.PRNGKey(0)

    def init(k, shape):
        return jax.random.normal(k, shape, dtype=jnp.float32) * 0.02

    def make_case(case_key, b, n, d, hidden, ff, out_c, density=0.3):
        kx, ka, kp = jax.random.split(case_key, 3)
        bn = b * n
        x = jax.random.normal(kx, (b, n, d), dtype=jnp.float32)
        adj = (jax.random.uniform(ka, (bn, bn)) < density).astype(jnp.float32)
        kk = jax.random.split(kp, 6)
        params = (
            init(kk[0], (d, hidden)),   # GCN weight
            init(kk[1], (1, hidden)),   # GCN bias
            init(kk[2], (hidden, ff)),  # backbone W1
            init(kk[3], (1, ff)),       # backbone b1
            init(kk[4], (ff, out_c)),   # backbone W2
            init(kk[5], (1, out_c)),    # backbone b2
        )
        return x, adj, params

    def check(y, y_ref, shape):
        assert y.shape == shape, y.shape
        assert jnp.allclose(y, y_ref, atol=2e-3, rtol=2e-2), \
            float(jnp.max(jnp.abs(y - y_ref)))

    k1, k2 = jax.random.split(key)

    # Case 1: small shapes consistent with the module docstring.  The large
    # default tiles collapse this to a single-block grid (overhead fast path).
    x, adj, params = make_case(k1, b=2, n=8, d=4, hidden=32, ff=64, out_c=8)
    a_hat_pad = prepare_adjacency(adj)      # static graph: preprocessed once
    padded = prepare_params(params)
    y = st_backbone_forward(x, a_hat_pad, padded, out_c=8)
    jax.block_until_ready(y)
    check(y, reference_forward(x, adj, params), (2, 8, 8))

    # Case 2: larger graph.
    x, adj, params = make_case(k2, b=4, n=96, d=4, hidden=32, ff=64, out_c=8)
    a_hat_pad = prepare_adjacency(adj)
    padded = prepare_params(params)
    y_ref = reference_forward(x, adj, params)

    # 2a: default (large) tiles, resident XW -> single-block fast path.
    y = st_backbone_forward(x, a_hat_pad, padded, out_c=8)
    jax.block_until_ready(y)
    check(y, y_ref, (4, 96, 8))

    # 2b: small tiles -> multi-tile k-reduction with in-kernel resident-XW
    #     slicing (accumulator init/epilogue + parallel row axis).
    y = st_backbone_forward(x, a_hat_pad, padded, out_c=8,
                            row_tile=128, k_tile=128)
    jax.block_until_ready(y)
    check(y, y_ref, (4, 96, 8))

    # 2c: streamed-XW fallback path (used when the graph is too large for a
    #     VMEM-resident XW).
    y = st_backbone_forward(x, a_hat_pad, padded, out_c=8,
                            row_tile=128, k_tile=128, xw_resident=False)
    jax.block_until_ready(y)
    check(y, y_ref, (4, 96, 8))

    print("KERNEL_OK")
</pallas_src>

<mosaic_0001>
module attributes {stable_mosaic.version = 11 : i64} {
  func.func @st_backbone_kernel(%arg0: i32, %arg1: i32, %arg2: memref<128x128xbf16, #tpu.memory_space<vmem>>, %arg3: memref<128x128xbf16, #tpu.memory_space<vmem>>, %arg4: memref<1x128xf32, #tpu.memory_space<vmem>>, %arg5: memref<128x128xbf16, #tpu.memory_space<vmem>>, %arg6: memref<1x128xf32, #tpu.memory_space<vmem>>, %arg7: memref<128x128xbf16, #tpu.memory_space<vmem>>, %arg8: memref<1x128xf32, #tpu.memory_space<vmem>>, %arg9: memref<128x128xf32, #tpu.memory_space<vmem>>, %arg10: memref<128x128xf32, #tpu.memory_space<vmem>>) attributes {dimension_semantics = [#tpu.dimension_semantics<parallel>, #tpu.dimension_semantics<arbitrary>], iteration_bounds = array<i64: 1, 1>, scalar_prefetch = 0 : i64, scratch_operands = 1 : i64, tpu.core_type = #tpu.core_type<tc>, window_params = [{transform_indices = @transform_0, window_bounds = array<i64: 128, 128>}, {pipeline_mode = #tpu.pipeline_mode<synchronous>, transform_indices = @transform_1, window_bounds = array<i64: 128, 128>}, {pipeline_mode = #tpu.pipeline_mode<synchronous>, transform_indices = @transform_2, window_bounds = array<i64: 1, 128>}, {pipeline_mode = #tpu.pipeline_mode<synchronous>, transform_indices = @transform_3, window_bounds = array<i64: 128, 128>}, {pipeline_mode = #tpu.pipeline_mode<synchronous>, transform_indices = @transform_4, window_bounds = array<i64: 1, 128>}, {pipeline_mode = #tpu.pipeline_mode<synchronous>, transform_indices = @transform_5, window_bounds = array<i64: 128, 128>}, {pipeline_mode = #tpu.pipeline_mode<synchronous>, transform_indices = @transform_6, window_bounds = array<i64: 1, 128>}, {transform_indices = @transform_7, window_bounds = array<i64: 128, 128>}]} {
    %c0_i32 = arith.constant 0 : i32
    %0 = arith.cmpi eq, %arg1, %c0_i32 : i32
    %1 = arith.extui %0 : i1 to i32
    %c0_i32_0 = arith.constant 0 : i32
    %2 = arith.cmpi ne, %1, %c0_i32_0 : i32
    scf.if %2 {
      %cst_9 = arith.constant 0.000000e+00 : f32
      %15 = vector.broadcast %cst_9 : f32 to vector<128x128xf32>
      %c0_10 = arith.constant 0 : index
      %c0_11 = arith.constant 0 : index
      %16 = vector.load %arg10[%c0_10, %c0_11] : memref<128x128xf32, #tpu.memory_space<vmem>>, vector<128x128xf32>
      tpu.vector_store %arg10[%c0_10, %c0_11], %15 {strides = array<i32>} : memref<128x128xf32, #tpu.memory_space<vmem>>, vector<128x128xf32>,
    } else {
    }
    %c128_i32 = arith.constant 128 : i32
    %3 = arith.muli %arg1, %c128_i32 : i32
    %4 = tpu.assume_multiple %3, 128 : i32
    %5 = arith.index_cast %4 : i32 to index
    %c0 = arith.constant 0 : index
    %6 = vector.load %arg3[%5, %c0] : memref<128x128xbf16, #tpu.memory_space<vmem>>, vector<128x128xbf16>
    %c0_1 = arith.constant 0 : index
    %c0_2 = arith.constant 0 : index
    %7 = vector.load %arg10[%c0_1, %c0_2] : memref<128x128xf32, #tpu.memory_space<vmem>>, vector<128x128xf32>
    %c0_3 = arith.constant 0 : index
    %c0_4 = arith.constant 0 : index
    %8 = vector.load %arg2[%c0_3, %c0_4] : memref<128x128xbf16, #tpu.memory_space<vmem>>, vector<128x128xbf16>
    %cst = arith.constant dense<0.000000e+00> : vector<128x128xf32>
    %9 = tpu.matmul %8, %6, %cst {dimension_numbers = #tpu.dot_dimension_numbers<[1], [0], [0], [1], [0, 0, 1, 1], [], []>} : vector<128x128xbf16>, vector<128x128xbf16>, vector<128x128xf32> -> vector<128x128xf32>
    %10 = arith.addf %7, %9 : vector<128x128xf32>
    %c0_5 = arith.constant 0 : index
    %c0_6 = arith.constant 0 : index
    %11 = vector.load %arg10[%c0_5, %c0_6] : memref<128x128xf32, #tpu.memory_space<vmem>>, vector<128x128xf32>
    tpu.vector_store %arg10[%c0_5, %c0_6], %10 {strides = array<i32>} : memref<128x128xf32, #tpu.memory_space<vmem>>, vector<128x128xf32>,
    %c0_i32_7 = arith.constant 0 : i32
    %12 = arith.cmpi eq, %arg1, %c0_i32_7 : i32
    %13 = arith.extui %12 : i1 to i32
    %c0_i32_8 = arith.constant 0 : i32
    %14 = arith.cmpi ne, %13, %c0_i32_8 : i32
    scf.if %14 {
      %c0_9 = arith.constant 0 : index
      %c0_10 = arith.constant 0 : index
      %15 = vector.load %arg10[%c0_9, %c0_10] : memref<128x128xf32, #tpu.memory_space<vmem>>, vector<128x128xf32>
      %c0_11 = arith.constant 0 : index
      %c0_12 = arith.constant 0 : index
      %16 = vector.load %arg4[%c0_11, %c0_12] : memref<1x128xf32, #tpu.memory_space<vmem>>, vector<1x128xf32>
      %17 = vector.broadcast %16 : vector<1x128xf32> to vector<128x128xf32>
      %18 = arith.addf %15, %17 : vector<128x128xf32>
      %19 = arith.truncf %18 : vector<128x128xf32> to vector<128x128xbf16>
      %c0_13 = arith.constant 0 : index
      %c0_14 = arith.constant 0 : index
      %20 = vector.load %arg5[%c0_13, %c0_14] : memref<128x128xbf16, #tpu.memory_space<vmem>>, vector<128x128xbf16>
      %cst_15 = arith.constant dense<0.000000e+00> : vector<128x128xf32>
      %21 = tpu.matmul %19, %20, %cst_15 {dimension_numbers = #tpu.dot_dimension_numbers<[1], [0], [0], [1], [0, 0, 1, 1], [], []>} : vector<128x128xbf16>, vector<128x128xbf16>, vector<128x128xf32> -> vector<128x128xf32>
      %c0_16 = arith.constant 0 : index
      %c0_17 = arith.constant 0 : index
      %22 = vector.load %arg6[%c0_16, %c0_17] : memref<1x128xf32, #tpu.memory_space<vmem>>, vector<1x128xf32>
      %23 = vector.broadcast %22 : vector<1x128xf32> to vector<128x128xf32>
      %24 = arith.addf %21, %23 : vector<128x128xf32>
      %25 = arith.mulf %24, %24 : vector<128x128xf32>
      %26 = arith.mulf %24, %25 : vector<128x128xf32>
      %cst_18 = arith.constant 4.471500e-02 : f32
      %27 = vector.broadcast %cst_18 : f32 to vector<128x128xf32>
      %28 = arith.mulf %27, %26 : vector<128x128xf32>
      %29 = arith.addf %24, %28 : vector<128x128xf32>
      %cst_19 = arith.constant 0.797884583 : f32
      %30 = vector.broadcast %cst_19 : f32 to vector<128x128xf32>
      %31 = arith.mulf %30, %29 : vector<128x128xf32>
      %32 = math.tanh %31 : vector<128x128xf32>
      %cst_20 = arith.constant 1.000000e+00 : f32
      %33 = vector.broadcast %cst_20 : f32 to vector<128x128xf32>
      %34 = arith.addf %33, %32 : vector<128x128xf32>
      %cst_21 = arith.constant 5.000000e-01 : f32
      %35 = vector.broadcast %cst_21 : f32 to vector<128x128xf32>
      %36 = arith.mulf %35, %34 : vector<128x128xf32>
      %37 = arith.mulf %24, %36 : vector<128x128xf32>
      %38 = arith.truncf %37 : vector<128x128xf32> to vector<128x128xbf16>
      %c0_22 = arith.constant 0 : index
      %c0_23 = arith.constant 0 : index
      %39 = vector.load %arg7[%c0_22, %c0_23] : memref<128x128xbf16, #tpu.memory_space<vmem>>, vector<128x128xbf16>
      %cst_24 = arith.constant dense<0.000000e+00> : vector<128x128xf32>
      %40 = tpu.matmul %38, %39, %cst_24 {dimension_numbers = #tpu.dot_dimension_numbers<[1], [0], [0], [1], [0, 0, 1, 1], [], []>} : vector<128x128xbf16>, vector<128x128xbf16>, vector<128x128xf32> -> vector<128x128xf32>
      %c0_25 = arith.constant 0 : index
      %c0_26 = arith.constant 0 : index
      %41 = vector.load %arg8[%c0_25, %c0_26] : memref<1x128xf32, #tpu.memory_space<vmem>>, vector<1x128xf32>
      %42 = vector.broadcast %41 : vector<1x128xf32> to vector<128x128xf32>
      %43 = arith.addf %40, %42 : vector<128x128xf32>
      %c0_27 = arith.constant 0 : index
      %c0_28 = arith.constant 0 : index
      %44 = vector.load %arg9[%c0_27, %c0_28] : memref<128x128xf32, #tpu.memory_space<vmem>>, vector<128x128xf32>
      tpu.vector_store %arg9[%c0_27, %c0_28], %43 {strides = array<i32>} : memref<128x128xf32, #tpu.memory_space<vmem>>, vector<128x128xf32>,
    } else {
    }
    return
  }
  func.func @transform_0(%arg0: i32, %arg1: i32) -> (i32, i32) {
    %c0_i32 = arith.constant 0 : i32
    return %arg0, %arg1 : i32, i32
  }
  func.func @transform_1(%arg0: i32, %arg1: i32) -> (i32, i32) {
    %c0_i32 = arith.constant 0 : i32
    %c0_i32_0 = arith.constant 0 : i32
    %c0_i32_1 = arith.constant 0 : i32
    return %c0_i32, %c0_i32_0 : i32, i32
  }
  func.func @transform_2(%arg0: i32, %arg1: i32) -> (i32, i32) {
    %c0_i32 = arith.constant 0 : i32
    %c0_i32_0 = arith.constant 0 : i32
    %c0_i32_1 = arith.constant 0 : i32
    return %c0_i32, %c0_i32_0 : i32, i32
  }
  func.func @transform_3(%arg0: i32, %arg1: i32) -> (i32, i32) {
    %c0_i32 = arith.constant 0 : i32
    %c0_i32_0 = arith.constant 0 : i32
    %c0_i32_1 = arith.constant 0 : i32
    return %c0_i32, %c0_i32_0 : i32, i32
  }
  func.func @transform_4(%arg0: i32, %arg1: i32) -> (i32, i32) {
    %c0_i32 = arith.constant 0 : i32
    %c0_i32_0 = arith.constant 0 : i32
    %c0_i32_1 = arith.constant 0 : i32
    return %c0_i32, %c0_i32_0 : i32, i32
  }
  func.func @transform_5(%arg0: i32, %arg1: i32) -> (i32, i32) {
    %c0_i32 = arith.constant 0 : i32
    %c0_i32_0 = arith.constant 0 : i32
    %c0_i32_1 = arith.constant 0 : i32
    return %c0_i32, %c0_i32_0 : i32, i32
  }
  func.func @transform_6(%arg0: i32, %arg1: i32) -> (i32, i32) {
    %c0_i32 = arith.constant 0 : i32
    %c0_i32_0 = arith.constant 0 : i32
    %c0_i32_1 = arith.constant 0 : i32
    return %c0_i32, %c0_i32_0 : i32, i32
  }
  func.func @transform_7(%arg0: i32, %arg1: i32) -> (i32, i32) {
    %c0_i32 = arith.constant 0 : i32
    %c0_i32_0 = arith.constant 0 : i32
    return %arg0, %c0_i32 : i32, i32
  }
}

</mosaic_0001>

<llo_original>
// kernel: st_backbone_forward.1
$region0: #{st_backbone_forward.1}
  #allocation0 [shape = 'u32[]', space=smem, size = 0x4, offset = 0x4, fixed_abs, tag = 'smem constant byte address 0x4 - core index']
  #allocation1 [shape = 'u32[144,128]{1,0:T(1,128)}', space=vmem, size = 0x12000, scoped, tag = 'internal scratch']
  #allocation2 [shape = 'f32[128,128]{1,0:T(8,128)}', space=vmem, size = 0x10000, scoped, tag = 'scratch operand']
  %s0 = inlined_call_operand.vmem [shape: bf16[128,128], index: 0, kind: input, shape index: {}]
  %s1 = inlined_call_operand.vmem [shape: bf16[128,128], index: 1, kind: input, shape index: {}]
  %s2 = inlined_call_operand.vmem [shape: f32[1,128], index: 2, kind: input, shape index: {}]
  %s3 = inlined_call_operand.hbm [shape: bf16[128,128], index: 3, kind: input, shape index: {}]
  %s4 = inlined_call_operand.vmem [shape: f32[1,128], index: 4, kind: input, shape index: {}]
  %s5 = inlined_call_operand.hbm [shape: bf16[128,128], index: 5, kind: input, shape index: {}]
  %s6 = inlined_call_operand.vmem [shape: f32[1,128], index: 6, kind: input, shape index: {}]
  %s7 = inlined_call_operand.vmem [shape: f32[128,128], index: 7, kind: output, shape index: {}]
  %s8 = sld [smem:[#allocation0]]
  $region54: #{st_backbone_forward.1} parent=0
    _
  %s10 = ssub.s32 1, %s8
  %s11 = scalar_select 0, %s10, %s8
  $region1: #{st_backbone_forward.1} parent=0
    #allocation3 [shape = 'u8[32768]{0}', space=vmem, size = 0x8000, scoped, tag = 'input window, operand 3, single buffered']
    #allocation4 [shape = 's32[1]{0}', space=sflag, size = 0x4, scoped, tag = 'scoped memory for st_backbone_forward.1']
    #allocation5 [shape = 'u8[32768]{0}', space=vmem, size = 0x8000, scoped, tag = 'input window, operand 5, single buffered']
    #allocation6 [shape = 's32[1]{0}', space=sflag, size = 0x4, scoped, tag = 'scoped memory for st_backbone_forward.1']
    %12 = vsyncpa [#allocation4], 0
    %13 = vsyncpa [#allocation6], 0
    // Predicated region
    $region2: #{st_backbone_forward.1} parent=1 // pred_check
      _
    $region3: #{st_backbone_forward.1} parent=1 // pred_check_branch
      %15 = sbr.rel (0) target = $region5
    $region4: #{st_backbone_forward.1} parent=1 // pred_region
      _
    $region5: #{st_backbone_forward.1} parent=1 // pred_fallthru
      _
    // Predicated region
    $region6: #{st_backbone_forward.1} parent=1 // pred_check
      _
    $region7: #{st_backbone_forward.1} parent=1 // pred_check_branch
      %17 = sbr.rel (0) target = $region9
    $region8: #{st_backbone_forward.1} parent=1 // pred_region
      _
    $region9: #{st_backbone_forward.1} parent=1 // pred_fallthru
      _
    // Predicated region
    $region10: #{st_backbone_forward.1} parent=1 // pred_check
      _
    $region11: #{st_backbone_forward.1} parent=1 // pred_check_branch
      %19 = sbr.rel (0) target = $region13
    $region12: #{st_backbone_forward.1} parent=1 // pred_region
      _
    $region13: #{st_backbone_forward.1} parent=1 // pred_fallthru
      _
    // Predicated region
    $region14: #{st_backbone_forward.1} parent=1 // pred_check
      _
    $region15: #{st_backbone_forward.1} parent=1 // pred_check_branch
      %21 = sbr.rel (0) target = $region17
    $region16: #{st_backbone_forward.1} parent=1 // pred_region
      %s23 = ssub.s32 1024, 1024
      %24 = vsyncadd [#allocation4], %s23
      %s25 = sshll.u32 [#allocation3], 4
      %s26 = int_to_ptr.vmem [resolvable:$true] %s25
      %31 = dma.hbm_to_vmem [thread:$0]  %s3, 1024, %s26, [#allocation4], 64, 64, 4
    $region17: #{st_backbone_forward.1} parent=1 // pred_fallthru
      _
    // Predicated region
    $region18: #{st_backbone_forward.1} parent=1 // pred_check
      _
    $region19: #{st_backbone_forward.1} parent=1 // pred_check_branch
      %33 = sbr.rel (0) target = $region21
    $region20: #{st_backbone_forward.1} parent=1 // pred_region
      _
    $region21: #{st_backbone_forward.1} parent=1 // pred_fallthru
      _
    // Predicated region
    $region22: #{st_backbone_forward.1} parent=1 // pred_check
      _
    $region23: #{st_backbone_forward.1} parent=1 // pred_check_branch
      %35 = sbr.rel (0) target = $region25
    $region24: #{st_backbone_forward.1} parent=1 // pred_region
      %s37 = ssub.s32 1024, 1024
      %38 = vsyncadd [#allocation6], %s37
      %s39 = sshll.u32 [#allocation5], 4
      %s40 = int_to_ptr.vmem [resolvable:$true] %s39
      %45 = dma.hbm_to_vmem [thread:$0]  %s5, 1024, %s40, [#allocation6], 64, 64, 4
    $region25: #{st_backbone_forward.1} parent=1 // pred_fallthru
      _
    // Predicated region
    $region26: #{st_backbone_forward.1} parent=1 // pred_check
      _
    $region27: #{st_backbone_forward.1} parent=1 // pred_check_branch
      %47 = sbr.rel (0) target = $region29
    $region28: #{st_backbone_forward.1} parent=1 // pred_region
      _
    $region29: #{st_backbone_forward.1} parent=1 // pred_fallthru
      _
    // Predicated region
    $region30: #{st_backbone_forward.1} parent=1 // pred_check
      _
    $region31: #{st_backbone_forward.1} parent=1 // pred_check_branch
      %49 = sbr.rel (0) target = $region33
    $region32: #{st_backbone_forward.1} parent=1 // pred_region
      %50 = dma.done [#allocation4], 1024
    $region33: #{st_backbone_forward.1} parent=1 // pred_fallthru
      _
    // Predicated region
    $region34: #{st_backbone_forward.1} parent=1 // pred_check
      _
    $region35: #{st_backbone_forward.1} parent=1 // pred_check_branch
      %52 = sbr.rel (0) target = $region37
    $region36: #{st_backbone_forward.1} parent=1 // pred_region
      %53 = dma.done [#allocation6], 1024
    $region37: #{st_backbone_forward.1} parent=1 // pred_fallthru
      _
    %p55 = scmp.eq.s32.totalorder 0, 0
    // Predicated region
    $region38: #{st_backbone_forward.1} parent=1 // pred_check
      %p56 = pneg %p55
    $region39: #{st_backbone_forward.1} parent=1 // pred_check_branch
      %58 = sbr.rel (%p56) target = $region41
    $region40: #{st_backbone_forward.1} parent=1 // pred_region
      %59 = vst [vmem:[#allocation2] sm:$0xff] 0.0
      %60 = vst [vmem:[#allocation2 + $0x8] sm:$0xff] 0.0
      %61 = vst [vmem:[#allocation2 + $0x10] sm:$0xff] 0.0
      %62 = vst [vmem:[#allocation2 + $0x18] sm:$0xff] 0.0
      %63 = vst [vmem:[#allocation2 + $0x20] sm:$0xff] 0.0
      %64 = vst [vmem:[#allocation2 + $0x28] sm:$0xff] 0.0
      %65 = vst [vmem:[#allocation2 + $0x30] sm:$0xff] 0.0
      %66 = vst [vmem:[#allocation2 + $0x38] sm:$0xff] 0.0
      %67 = vst [vmem:[#allocation2 + $0x40] sm:$0xff] 0.0
      %68 = vst [vmem:[#allocation2 + $0x48] sm:$0xff] 0.0
      %69 = vst [vmem:[#allocation2 + $0x50] sm:$0xff] 0.0
      %70 = vst [vmem:[#allocation2 + $0x58] sm:$0xff] 0.0
      %71 = vst [vmem:[#allocation2 + $0x60] sm:$0xff] 0.0
      %72 = vst [vmem:[#allocation2 + $0x68] sm:$0xff] 0.0
      %73 = vst [vmem:[#allocation2 + $0x70] sm:$0xff] 0.0
      %74 = vst [vmem:[#allocation2 + $0x78] sm:$0xff] 0.0
    $region41: #{st_backbone_forward.1} parent=1 // pred_fallthru
      _
    %s75 = smul.u32 0, 128
    %s76 = sshra.s32 %s75, 3
    %s77 = sand.u32 %s75, 7
    %s78 = smul.addr %s76, 4
    %s79 = scalar_lea.vmem %s1, %s78
    %v80 = vld [vmem:[%s79] sm:$0xf]
    %v81 = vld [vmem:[%s79 + $0x4] sm:$0xf]
    %v82 = vld [vmem:[%s79 + $0x8] sm:$0xf]
    %v83 = vld [vmem:[%s79 + $0xc] sm:$0xf]
    %v84 = vld [vmem:[%s79 + $0x10] sm:$0xf]
    %v85 = vld [vmem:[%s79 + $0x14] sm:$0xf]
    %v86 = vld [vmem:[%s79 + $0x18] sm:$0xf]
    %v87 = vld [vmem:[%s79 + $0x1c] sm:$0xf]
    %v88 = vld [vmem:[%s79 + $0x20] sm:$0xf]
    %v89 = vld [vmem:[%s79 + $0x24] sm:$0xf]
    %v90 = vld [vmem:[%s79 + $0x28] sm:$0xf]
    %v91 = vld [vmem:[%s79 + $0x2c] sm:$0xf]
    %v92 = vld [vmem:[%s79 + $0x30] sm:$0xf]
    %v93 = vld [vmem:[%s79 + $0x34] sm:$0xf]
    %v94 = vld [vmem:[%s79 + $0x38] sm:$0xf]
    %v95 = vld [vmem:[%s79 + $0x3c] sm:$0xf]
    %v96 = vld [vmem:[#allocation2] sm:$0xff]
    %v97 = vld [vmem:[#allocation2 + $0x8] sm:$0xff]
    %v98 = vld [vmem:[#allocation2 + $0x10] sm:$0xff]
    %v99 = vld [vmem:[#allocation2 + $0x18] sm:$0xff]
    %v100 = vld [vmem:[#allocation2 + $0x20] sm:$0xff]
    %v101 = vld [vmem:[#allocation2 + $0x28] sm:$0xff]
    %v102 = vld [vmem:[#allocation2 + $0x30] sm:$0xff]
    %v103 = vld [vmem:[#allocation2 + $0x38] sm:$0xff]
    %v104 = vld [vmem:[#allocation2 + $0x40] sm:$0xff]
    %v105 = vld [vmem:[#allocation2 + $0x48] sm:$0xff]
    %v106 = vld [vmem:[#allocation2 + $0x50] sm:$0xff]
    %v107 = vld [vmem:[#allocation2 + $0x58] sm:$0xff]
    %v108 = vld [vmem:[#allocation2 + $0x60] sm:$0xff]
    %v109 = vld [vmem:[#allocation2 + $0x68] sm:$0xff]
    %v110 = vld [vmem:[#allocation2 + $0x70] sm:$0xff]
    %v111 = vld [vmem:[#allocation2 + $0x78] sm:$0xff]
    %v112 = vld [vmem:[%s0] sm:$0xf]
    %v113 = vld [vmem:[%s0 + $0x4] sm:$0xf]
    %v114 = vld [vmem:[%s0 + $0x8] sm:$0xf]
    %v115 = vld [vmem:[%s0 + $0xc] sm:$0xf]
    %v116 = vld [vmem:[%s0 + $0x10] sm:$0xf]
    %v117 = vld [vmem:[%s0 + $0x14] sm:$0xf]
    %v118 = vld [vmem:[%s0 + $0x18] sm:$0xf]
    %v119 = vld [vmem:[%s0 + $0x1c] sm:$0xf]
    %v120 = vld [vmem:[%s0 + $0x20] sm:$0xf]
    %v121 = vld [vmem:[%s0 + $0x24] sm:$0xf]
    %v122 = vld [vmem:[%s0 + $0x28] sm:$0xf]
    %v123 = vld [vmem:[%s0 + $0x2c] sm:$0xf]
    %v124 = vld [vmem:[%s0 + $0x30] sm:$0xf]
    %v125 = vld [vmem:[%s0 + $0x34] sm:$0xf]
    %v126 = vld [vmem:[%s0 + $0x38] sm:$0xf]
    %v127 = vld [vmem:[%s0 + $0x3c] sm:$0xf]
    %v144 = vunpack.c.l.b16 %v112
    %v145 = vunpack.c.l.b16 %v113
    %v146 = vunpack.c.l.b16 %v114
    %v147 = vunpack.c.l.b16 %v115
    %v148 = vunpack.c.l.b16 %v116
    %v149 = vunpack.c.l.b16 %v117
    %v150 = vunpack.c.l.b16 %v118
    %v151 = vunpack.c.l.b16 %v119
    %v152 = vunpack.c.l.b16 %v120
    %v153 = vunpack.c.l.b16 %v121
    %v154 = vunpack.c.l.b16 %v122
    %v155 = vunpack.c.l.b16 %v123
    %v156 = vunpack.c.l.b16 %v124
    %v157 = vunpack.c.l.b16 %v125
    %v158 = vunpack.c.l.b16 %v126
    %v159 = vunpack.c.l.b16 %v127
    %v160 = vpack.c.b16 %v145, %v144
    %v161 = vpack.c.b16 %v147, %v146
    %v162 = vpack.c.b16 %v149, %v148
    %v163 = vpack.c.b16 %v151, %v150
    %v164 = vpack.c.b16 %v153, %v152
    %v165 = vpack.c.b16 %v155, %v154
    %v166 = vpack.c.b16 %v157, %v156
    %v167 = vpack.c.b16 %v159, %v158
    %v192 = vunpack.c.l.b16 %v80
    %v193 = vunpack.c.l.b16 %v81
    %v194 = vunpack.c.l.b16 %v82
    %v195 = vunpack.c.l.b16 %v83
    %v196 = vunpack.c.l.b16 %v84
    %v197 = vunpack.c.l.b16 %v85
    %v198 = vunpack.c.l.b16 %v86
    %v199 = vunpack.c.l.b16 %v87
    %v200 = vunpack.c.l.b16 %v88
    %v201 = vunpack.c.l.b16 %v89
    %v202 = vunpack.c.l.b16 %v90
    %v203 = vunpack.c.l.b16 %v91
    %v204 = vunpack.c.l.b16 %v92
    %v205 = vunpack.c.l.b16 %v93
    %v206 = vunpack.c.l.b16 %v94
    %v207 = vunpack.c.l.b16 %v95
    %v208 = vpack.c.b16 %v193, %v192
    %v209 = vpack.c.b16 %v195, %v194
    %v210 = vpack.c.b16 %v197, %v196
    %v211 = vpack.c.b16 %v199, %v198
    %v212 = vpack.c.b16 %v201, %v200
    %v213 = vpack.c.b16 %v203, %v202
    %v214 = vpack.c.b16 %v205, %v204
    %v215 = vpack.c.b16 %v207, %v206
    %224 = vmatprep.subr.bf16.mxu0 0
    %225 = vmatpush1.bf16.msra.mxu0 %v215
    %226 = vmatprep.subr.bf16.mxu0 0
    %227 = vmatpush1.bf16.msra.mxu0 %v214
    %228 = vmatprep.subr.bf16.mxu0 0
    %229 = vmatpush1.bf16.msra.mxu0 %v213
    %230 = vmatprep.subr.bf16.mxu0 0
    %231 = vmatpush1.bf16.msra.mxu0 %v212
    %232 = vmatprep.subr.bf16.mxu0 0
    %233 = vmatpush1.bf16.msra.mxu0 %v211
    %234 = vmatprep.subr.bf16.mxu0 0
    %235 = vmatpush1.bf16.msra.mxu0 %v210
    %236 = vmatprep.subr.bf16.mxu0 0
    %237 = vmatpush1.bf16.msra.mxu0 %v209
    %238 = vmatprep.subr.bf16.mxu0 0
    %239 = vmatpush1.bf16.msra.mxu0 %v208
    %240 = vmatprep.subr.bf16.mxu0 0
    %241 = vmatpush2.bf16.msra.mxu0 0
    %242 = vmatprep.subr.bf16.mxu0 0
    %243 = vmatpush2.bf16.msra.mxu0 0
    %244 = vmatprep.subr.bf16.mxu0 0
    %245 = vmatpush2.bf16.msra.mxu0 0
    %246 = vmatprep.subr.bf16.mxu0 0
    %247 = vmatpush2.bf16.msra.mxu0 0
    %248 = vmatprep.subr.bf16.mxu0 0
    %249 = vmatpush2.bf16.msra.mxu0 0
    %250 = vmatprep.subr.bf16.mxu0 0
    %251 = vmatpush2.bf16.msra.mxu0 0
    %252 = vmatprep.subr.bf16.mxu0 0
    %253 = vmatpush2.bf16.msra.mxu0 0
    %254 = vmatprep.subr.bf16.mxu0 0
    %255 = vmatpush2.bf16.msra.mxu0 0
    %256 = vmatprep.mubr.bf16.mxu0 0
    %257 = vmatmul.mubr.bf16.gmra.mxu0 %v160
    %v258 = vpop.f32.mrf.mxu0
    %v259 = vadd.f32 0.0, %v258
    %v260 = vpop.f32.mrf.mxu0
    %v261 = vpop.f32.mrf.mxu0
    %v262 = vadd.f32 0.0, %v261
    %v263 = vpop.f32.mrf.mxu0
    %264 = vmatprep.mubr.bf16.mxu0 0
    %265 = vmatmul.mubr.bf16.gmra.mxu0 %v161
    %v266 = vpop.f32.mrf.mxu0
    %v267 = vadd.f32 0.0, %v266
    %v268 = vpop.f32.mrf.mxu0
    %v269 = vpop.f32.mrf.mxu0
    %v270 = vadd.f32 0.0, %v269
    %v271 = vpop.f32.mrf.mxu0
    %272 = vmatprep.mubr.bf16.mxu0 0
    %273 = vmatmul.mubr.bf16.gmra.mxu0 %v162
    %v274 = vpop.f32.mrf.mxu0
    %v275 = vadd.f32 0.0, %v274
    %v276 = vpop.f32.mrf.mxu0
    %v277 = vpop.f32.mrf.mxu0
    %v278 = vadd.f32 0.0, %v277
    %v279 = vpop.f32.mrf.mxu0
    %280 = vmatprep.mubr.bf16.mxu0 0
    %281 = vmatmul.mubr.bf16.gmra.mxu0 %v163
    %v282 = vpop.f32.mrf.mxu0
    %v283 = vadd.f32 0.0, %v282
    %v284 = vpop.f32.mrf.mxu0
    %v285 = vpop.f32.mrf.mxu0
    %v286 = vadd.f32 0.0, %v285
    %v287 = vpop.f32.mrf.mxu0
    %288 = vmatprep.mubr.bf16.mxu0 0
    %289 = vmatmul.mubr.bf16.gmra.mxu0 %v164
    %v290 = vpop.f32.mrf.mxu0
    %v291 = vadd.f32 0.0, %v290
    %v292 = vpop.f32.mrf.mxu0
    %v293 = vpop.f32.mrf.mxu0
    %v294 = vadd.f32 0.0, %v293
    %v295 = vpop.f32.mrf.mxu0
    %296 = vmatprep.mubr.bf16.mxu0 0
    %297 = vmatmul.mubr.bf16.gmra.mxu0 %v165
    %v298 = vpop.f32.mrf.mxu0
    %v299 = vadd.f32 0.0, %v298
    %v300 = vpop.f32.mrf.mxu0
    %v301 = vpop.f32.mrf.mxu0
    %v302 = vadd.f32 0.0, %v301
    %v303 = vpop.f32.mrf.mxu0
    %304 = vmatprep.mubr.bf16.mxu0 0
    %305 = vmatmul.mubr.bf16.gmra.mxu0 %v166
    %v306 = vpop.f32.mrf.mxu0
    %v307 = vadd.f32 0.0, %v306
    %v308 = vpop.f32.mrf.mxu0
    %v309 = vpop.f32.mrf.mxu0
    %v310 = vadd.f32 0.0, %v309
    %v311 = vpop.f32.mrf.mxu0
    %312 = vmatprep.mubr.bf16.mxu0 0
    %313 = vmatmul.mubr.bf16.gmra.mxu0 %v167
    %v314 = vpop.f32.mrf.mxu0
    %v315 = vadd.f32 0.0, %v314
    %v316 = vpop.f32.mrf.mxu0
    %v317 = vpop.f32.mrf.mxu0
    %v318 = vadd.f32 0.0, %v317
    %v319 = vpop.f32.mrf.mxu0
    %320 = vdwg.mxu0
    %v321 = vadd.f32 %v96, %v259
    %v322 = vadd.f32 %v97, %v262
    %v323 = vadd.f32 %v98, %v267
    %v324 = vadd.f32 %v99, %v270
    %v325 = vadd.f32 %v100, %v275
    %v326 = vadd.f32 %v101, %v278
    %v327 = vadd.f32 %v102, %v283
    %v328 = vadd.f32 %v103, %v286
    %v329 = vadd.f32 %v104, %v291
    %v330 = vadd.f32 %v105, %v294
    %v331 = vadd.f32 %v106, %v299
    %v332 = vadd.f32 %v107, %v302
    %v333 = vadd.f32 %v108, %v307
    %v334 = vadd.f32 %v109, %v310
    %v335 = vadd.f32 %v110, %v315
    %v336 = vadd.f32 %v111, %v318
    %337 = vst [vmem:[#allocation2] sm:$0xff] %v321
    %338 = vst [vmem:[#allocation2 + $0x8] sm:$0xff] %v322
    %339 = vst [vmem:[#allocation2 + $0x10] sm:$0xff] %v323
    %340 = vst [vmem:[#allocation2 + $0x18] sm:$0xff] %v324
    %341 = vst [vmem:[#allocation2 + $0x20] sm:$0xff] %v325
    %342 = vst [vmem:[#allocation2 + $0x28] sm:$0xff] %v326
    %343 = vst [vmem:[#allocation2 + $0x30] sm:$0xff] %v327
    %344 = vst [vmem:[#allocation2 + $0x38] sm:$0xff] %v328
    %345 = vst [vmem:[#allocation2 + $0x40] sm:$0xff] %v329
    %346 = vst [vmem:[#allocation2 + $0x48] sm:$0xff] %v330
    %347 = vst [vmem:[#allocation2 + $0x50] sm:$0xff] %v331
    %348 = vst [vmem:[#allocation2 + $0x58] sm:$0xff] %v332
    %349 = vst [vmem:[#allocation2 + $0x60] sm:$0xff] %v333
    %350 = vst [vmem:[#allocation2 + $0x68] sm:$0xff] %v334
    %351 = vst [vmem:[#allocation2 + $0x70] sm:$0xff] %v335
    %352 = vst [vmem:[#allocation2 + $0x78] sm:$0xff] %v336
    // Predicated region
    $region42: #{st_backbone_forward.1} parent=1 // pred_check
      %p353 = pneg %p55
    $region43: #{st_backbone_forward.1} parent=1 // pred_check_branch
      %355 = sbr.rel (%p353) target = $region45
    $region44: #{st_backbone_forward.1} parent=1 // pred_region
      %v356 = vld [vmem:[#allocation2] sm:$0xff]
      %v357 = vld [vmem:[#allocation2 + $0x8] sm:$0xff]
      %v358 = vld [vmem:[#allocation2 + $0x10] sm:$0xff]
      %v359 = vld [vmem:[#allocation2 + $0x18] sm:$0xff]
      %v360 = vld [vmem:[#allocation2 + $0x20] sm:$0xff]
      %v361 = vld [vmem:[#allocation2 + $0x28] sm:$0xff]
      %v362 = vld [vmem:[#allocation2 + $0x30] sm:$0xff]
      %v363 = vld [vmem:[#allocation2 + $0x38] sm:$0xff]
      %v364 = vld [vmem:[#allocation2 + $0x40] sm:$0xff]
      %v365 = vld [vmem:[#allocation2 + $0x48] sm:$0xff]
      %v366 = vld [vmem:[#allocation2 + $0x50] sm:$0xff]
      %v367 = vld [vmem:[#allocation2 + $0x58] sm:$0xff]
      %v368 = vld [vmem:[#allocation2 + $0x60] sm:$0xff]
      %v369 = vld [vmem:[#allocation2 + $0x68] sm:$0xff]
      %v370 = vld [vmem:[#allocation2 + $0x70] sm:$0xff]
      %v371 = vld [vmem:[#allocation2 + $0x78] sm:$0xff]
      %v372 = vld [vmem:[%s2] sm:$0x1]
      %v374 = vlaneseq
      %v375 = vshrl.u32 %v374, 7
      %v376 = vsub.s32 0, %v375
      %v377 = vrot.slane %v372, %v376
      %v379 = vadd.f32 %v356, %v377
      %v380 = vadd.f32 %v357, %v377
      %v381 = vadd.f32 %v358, %v377
      %v382 = vadd.f32 %v359, %v377
      %v383 = vadd.f32 %v360, %v377
      %v384 = vadd.f32 %v361, %v377
      %v385 = vadd.f32 %v362, %v377
      %v386 = vadd.f32 %v363, %v377
      %v387 = vadd.f32 %v364, %v377
      %v388 = vadd.f32 %v365, %v377
      %v389 = vadd.f32 %v366, %v377
      %v390 = vadd.f32 %v367, %v377
      %v391 = vadd.f32 %v368, %v377
      %v392 = vadd.f32 %v369, %v377
      %v393 = vadd.f32 %v370, %v377
      %v394 = vadd.f32 %v371, %v377
      %v395 = vpack.c.bf16 %v380, %v379
      %v396 = vpack.c.bf16 %v382, %v381
      %v397 = vpack.c.bf16 %v384, %v383
      %v398 = vpack.c.bf16 %v386, %v385
      %v399 = vpack.c.bf16 %v388, %v387
      %v400 = vpack.c.bf16 %v390, %v389
      %v401 = vpack.c.bf16 %v392, %v391
      %v402 = vpack.c.bf16 %v394, %v393
      %v403 = vld [vmem:[#allocation3] sm:$0xf]
      %v404 = vld [vmem:[#allocation3 + $0x4] sm:$0xf]
      %v405 = vld [vmem:[#allocation3 + $0x8] sm:$0xf]
      %v406 = vld [vmem:[#allocation3 + $0xc] sm:$0xf]
      %v407 = vld [vmem:[#allocation3 + $0x10] sm:$0xf]
      %v408 = vld [vmem:[#allocation3 + $0x14] sm:$0xf]
      %v409 = vld [vmem:[#allocation3 + $0x18] sm:$0xf]
      %v410 = vld [vmem:[#allocation3 + $0x1c] sm:$0xf]
      %v411 = vld [vmem:[#allocation3 + $0x20] sm:$0xf]
      %v412 = vld [vmem:[#allocation3 + $0x24] sm:$0xf]
      %v413 = vld [vmem:[#allocation3 + $0x28] sm:$0xf]
      %v414 = vld [vmem:[#allocation3 + $0x2c] sm:$0xf]
      %v415 = vld [vmem:[#allocation3 + $0x30] sm:$0xf]
      %v416 = vld [vmem:[#allocation3 + $0x34] sm:$0xf]
      %v417 = vld [vmem:[#allocation3 + $0x38] sm:$0xf]
      %v418 = vld [vmem:[#allocation3 + $0x3c] sm:$0xf]
      %v419 = vld [vmem:[%s4] sm:$0x1]
      %v421 = vlaneseq
      %v422 = vshrl.u32 %v421, 7
      %v423 = vsub.s32 0, %v422
      %v424 = vrot.slane %v419, %v423
      %v442 = vunpack.c.l.b16 %v403
      %v443 = vunpack.c.l.b16 %v404
      %v444 = vunpack.c.l.b16 %v405
      %v445 = vunpack.c.l.b16 %v406
      %v446 = vunpack.c.l.b16 %v407
      %v447 = vunpack.c.l.b16 %v408
      %v448 = vunpack.c.l.b16 %v409
      %v449 = vunpack.c.l.b16 %v410
      %v450 = vunpack.c.l.b16 %v411
      %v451 = vunpack.c.l.b16 %v412
      %v452 = vunpack.c.l.b16 %v413
      %v453 = vunpack.c.l.b16 %v414
      %v454 = vunpack.c.l.b16 %v415
      %v455 = vunpack.c.l.b16 %v416
      %v456 = vunpack.c.l.b16 %v417
      %v457 = vunpack.c.l.b16 %v418
      %v458 = vpack.c.b16 %v443, %v442
      %v459 = vpack.c.b16 %v445, %v444
      %v460 = vpack.c.b16 %v447, %v446
      %v461 = vpack.c.b16 %v449, %v448
      %v462 = vpack.c.b16 %v451, %v450
      %v463 = vpack.c.b16 %v453, %v452
      %v464 = vpack.c.b16 %v455, %v454
      %v465 = vpack.c.b16 %v457, %v456
      %474 = vmatprep.subr.bf16.mxu0 0
      %475 = vmatpush1.bf16.msra.mxu0 %v465
      %476 = vmatprep.subr.bf16.mxu0 0
      %477 = vmatpush1.bf16.msra.mxu0 %v464
      %478 = vmatprep.subr.bf16.mxu0 0
      %479 = vmatpush1.bf16.msra.mxu0 %v463
      %480 = vmatprep.subr.bf16.mxu0 0
      %481 = vmatpush1.bf16.msra.mxu0 %v462
      %482 = vmatprep.subr.bf16.mxu0 0
      %483 = vmatpush1.bf16.msra.mxu0 %v461
      %484 = vmatprep.subr.bf16.mxu0 0
      %485 = vmatpush1.bf16.msra.mxu0 %v460
      %486 = vmatprep.subr.bf16.mxu0 0
      %487 = vmatpush1.bf16.msra.mxu0 %v459
      %488 = vmatprep.subr.bf16.mxu0 0
      %489 = vmatpush1.bf16.msra.mxu0 %v458
      %490 = vmatprep.subr.bf16.mxu0 0
      %491 = vmatpush2.bf16.msra.mxu0 0
      %492 = vmatprep.subr.bf16.mxu0 0
      %493 = vmatpush2.bf16.msra.mxu0 0
      %494 = vmatprep.subr.bf16.mxu0 0
      %495 = vmatpush2.bf16.msra.mxu0 0
      %496 = vmatprep.subr.bf16.mxu0 0
      %497 = vmatpush2.bf16.msra.mxu0 0
      %498 = vmatprep.subr.bf16.mxu0 0
      %499 = vmatpush2.bf16.msra.mxu0 0
      %500 = vmatprep.subr.bf16.mxu0 0
      %501 = vmatpush2.bf16.msra.mxu0 0
      %502 = vmatprep.subr.bf16.mxu0 0
      %503 = vmatpush2.bf16.msra.mxu0 0
      %504 = vmatprep.subr.bf16.mxu0 0
      %505 = vmatpush2.bf16.msra.mxu0 0
      %506 = vmatprep.mubr.bf16.mxu0 0
      %507 = vmatmul.mubr.bf16.gmra.mxu0 %v395
      %v508 = vpop.f32.mrf.mxu0
      %v509 = vadd.f32 %v424, %v508
      %v510 = vpop.f32.mrf.mxu0
      %v511 = vpop.f32.mrf.mxu0
      %v512 = vadd.f32 %v424, %v511
      %v513 = vpop.f32.mrf.mxu0
      %514 = vmatprep.mubr.bf16.mxu0 0
      %515 = vmatmul.mubr.bf16.gmra.mxu0 %v396
      %v516 = vpop.f32.mrf.mxu0
      %v517 = vadd.f32 %v424, %v516
      %v518 = vpop.f32.mrf.mxu0
      %v519 = vpop.f32.mrf.mxu0
      %v520 = vadd.f32 %v424, %v519
      %v521 = vpop.f32.mrf.mxu0
      %522 = vmatprep.mubr.bf16.mxu0 0
      %523 = vmatmul.mubr.bf16.gmra.mxu0 %v397
      %v524 = vpop.f32.mrf.mxu0
      %v525 = vadd.f32 %v424, %v524
      %v526 = vpop.f32.mrf.mxu0
      %v527 = vpop.f32.mrf.mxu0
      %v528 = vadd.f32 %v424, %v527
      %v529 = vpop.f32.mrf.mxu0
      %530 = vmatprep.mubr.bf16.mxu0 0
      %531 = vmatmul.mubr.bf16.gmra.mxu0 %v398
      %v532 = vpop.f32.mrf.mxu0
      %v533 = vadd.f32 %v424, %v532
      %v534 = vpop.f32.mrf.mxu0
      %v535 = vpop.f32.mrf.mxu0
      %v536 = vadd.f32 %v424, %v535
      %v537 = vpop.f32.mrf.mxu0
      %538 = vmatprep.mubr.bf16.mxu0 0
      %539 = vmatmul.mubr.bf16.gmra.mxu0 %v399
      %v540 = vpop.f32.mrf.mxu0
      %v541 = vadd.f32 %v424, %v540
      %v542 = vpop.f32.mrf.mxu0
      %v543 = vpop.f32.mrf.mxu0
      %v544 = vadd.f32 %v424, %v543
      %v545 = vpop.f32.mrf.mxu0
      %546 = vmatprep.mubr.bf16.mxu0 0
      %547 = vmatmul.mubr.bf16.gmra.mxu0 %v400
      %v548 = vpop.f32.mrf.mxu0
      %v549 = vadd.f32 %v424, %v548
      %v550 = vpop.f32.mrf.mxu0
      %v551 = vpop.f32.mrf.mxu0
      %v552 = vadd.f32 %v424, %v551
      %v553 = vpop.f32.mrf.mxu0
      %554 = vmatprep.mubr.bf16.mxu0 0
      %555 = vmatmul.mubr.bf16.gmra.mxu0 %v401
      %v556 = vpop.f32.mrf.mxu0
      %v557 = vadd.f32 %v424, %v556
      %v558 = vpop.f32.mrf.mxu0
      %v559 = vpop.f32.mrf.mxu0
      %v560 = vadd.f32 %v424, %v559
      %v561 = vpop.f32.mrf.mxu0
      %562 = vmatprep.mubr.bf16.mxu0 0
      %563 = vmatmul.mubr.bf16.gmra.mxu0 %v402
      %v564 = vpop.f32.mrf.mxu0
      %v565 = vadd.f32 %v424, %v564
      %v566 = vpop.f32.mrf.mxu0
      %v567 = vpop.f32.mrf.mxu0
      %v568 = vadd.f32 %v424, %v567
      %v569 = vpop.f32.mrf.mxu0
      %570 = vdwg.mxu0
      %v571 = vmul.f32 %v509, %v509
      %v572 = vmul.f32 %v512, %v512
      %v573 = vmul.f32 %v517, %v517
      %v574 = vmul.f32 %v520, %v520
      %v575 = vmul.f32 %v525, %v525
      %v576 = vmul.f32 %v528, %v528
      %v577 = vmul.f32 %v533, %v533
      %v578 = vmul.f32 %v536, %v536
      %v579 = vmul.f32 %v541, %v541
      %v580 = vmul.f32 %v544, %v544
      %v581 = vmul.f32 %v549, %v549
      %v582 = vmul.f32 %v552, %v552
      %v583 = vmul.f32 %v557, %v557
      %v584 = vmul.f32 %v560, %v560
      %v585 = vmul.f32 %v565, %v565
      %v586 = vmul.f32 %v568, %v568
      %v587 = vmul.f32 %v509, %v571
      %v588 = vmul.f32 %v512, %v572
      %v589 = vmul.f32 %v517, %v573
      %v590 = vmul.f32 %v520, %v574
      %v591 = vmul.f32 %v525, %v575
      %v592 = vmul.f32 %v528, %v576
      %v593 = vmul.f32 %v533, %v577
      %v594 = vmul.f32 %v536, %v578
      %v595 = vmul.f32 %v541, %v579
      %v596 = vmul.f32 %v544, %v580
      %v597 = vmul.f32 %v549, %v581
      %v598 = vmul.f32 %v552, %v582
      %v599 = vmul.f32 %v557, %v583
      %v600 = vmul.f32 %v560, %v584
      %v601 = vmul.f32 %v565, %v585
      %v602 = vmul.f32 %v568, %v586
      %v603 = vmul.f32 %v587, 0.044715
      %v604 = vmul.f32 %v588, 0.044715
      %v605 = vmul.f32 %v589, 0.044715
      %v606 = vmul.f32 %v590, 0.044715
      %v607 = vmul.f32 %v591, 0.044715
      %v608 = vmul.f32 %v592, 0.044715
      %v609 = vmul.f32 %v593, 0.044715
      %v610 = vmul.f32 %v594, 0.044715
      %v611 = vmul.f32 %v595, 0.044715
      %v612 = vmul.f32 %v596, 0.044715
      %v613 = vmul.f32 %v597, 0.044715
      %v614 = vmul.f32 %v598, 0.044715
      %v615 = vmul.f32 %v599, 0.044715
      %v616 = vmul.f32 %v600, 0.044715
      %v617 = vmul.f32 %v601, 0.044715
      %v618 = vmul.f32 %v602, 0.044715
      %v619 = vadd.f32 %v509, %v603
      %v620 = vadd.f32 %v512, %v604
      %v621 = vadd.f32 %v517, %v605
      %v622 = vadd.f32 %v520, %v606
      %v623 = vadd.f32 %v525, %v607
      %v624 = vadd.f32 %v528, %v608
      %v625 = vadd.f32 %v533, %v609
      %v626 = vadd.f32 %v536, %v610
      %v627 = vadd.f32 %v541, %v611
      %v628 = vadd.f32 %v544, %v612
      %v629 = vadd.f32 %v549, %v613
      %v630 = vadd.f32 %v552, %v614
      %v631 = vadd.f32 %v557, %v615
      %v632 = vadd.f32 %v560, %v616
      %v633 = vadd.f32 %v565, %v617
      %v634 = vadd.f32 %v568, %v618
      %v635 = vmul.f32 %v619, 0.7978846
      %v636 = vmul.f32 %v620, 0.7978846
      %v637 = vmul.f32 %v621, 0.7978846
      %v638 = vmul.f32 %v622, 0.7978846
      %v639 = vmul.f32 %v623, 0.7978846
      %v640 = vmul.f32 %v624, 0.7978846
      %v641 = vmul.f32 %v625, 0.7978846
      %v642 = vmul.f32 %v626, 0.7978846
      %v643 = vmul.f32 %v627, 0.7978846
      %v644 = vmul.f32 %v628, 0.7978846
      %v645 = vmul.f32 %v629, 0.7978846
      %v646 = vmul.f32 %v630, 0.7978846
      %v647 = vmul.f32 %v631, 0.7978846
      %v648 = vmul.f32 %v632, 0.7978846
      %v649 = vmul.f32 %v633, 0.7978846
      %v650 = vmul.f32 %v634, 0.7978846
      %v651 = vtanh.pop %v635
      %v652 = vtanh.pop %v636
      %v653 = vtanh.pop %v637
      %v654 = vtanh.pop %v638
      %v655 = vtanh.pop %v639
      %v656 = vtanh.pop %v640
      %v657 = vtanh.pop %v641
      %v658 = vtanh.pop %v642
      %v659 = vtanh.pop %v643
      %v660 = vtanh.pop %v644
      %v661 = vtanh.pop %v645
      %v662 = vtanh.pop %v646
      %v663 = vtanh.pop %v647
      %v664 = vtanh.pop %v648
      %v665 = vtanh.pop %v649
      %v666 = vtanh.pop %v650
      %v667 = vadd.f32 %v651, 1.0
      %v668 = vadd.f32 %v652, 1.0
      %v669 = vadd.f32 %v653, 1.0
      %v670 = vadd.f32 %v654, 1.0
      %v671 = vadd.f32 %v655, 1.0
      %v672 = vadd.f32 %v656, 1.0
      %v673 = vadd.f32 %v657, 1.0
      %v674 = vadd.f32 %v658, 1.0
      %v675 = vadd.f32 %v659, 1.0
      %v676 = vadd.f32 %v660, 1.0
      %v677 = vadd.f32 %v661, 1.0
      %v678 = vadd.f32 %v662, 1.0
      %v679 = vadd.f32 %v663, 1.0
      %v680 = vadd.f32 %v664, 1.0
      %v681 = vadd.f32 %v665, 1.0
      %v682 = vadd.f32 %v666, 1.0
      %v683 = vmul.f32 %v667, 0.5
      %v684 = vmul.f32 %v668, 0.5
      %v685 = vmul.f32 %v669, 0.5
      %v686 = vmul.f32 %v670, 0.5
      %v687 = vmul.f32 %v671, 0.5
      %v688 = vmul.f32 %v672, 0.5
      %v689 = vmul.f32 %v673, 0.5
      %v690 = vmul.f32 %v674, 0.5
      %v691 = vmul.f32 %v675, 0.5
      %v692 = vmul.f32 %v676, 0.5
      %v693 = vmul.f32 %v677, 0.5
      %v694 = vmul.f32 %v678, 0.5
      %v695 = vmul.f32 %v679, 0.5
      %v696 = vmul.f32 %v680, 0.5
      %v697 = vmul.f32 %v681, 0.5
      %v698 = vmul.f32 %v682, 0.5
      %v699 = vmul.f32 %v509, %v683
      %v700 = vmul.f32 %v512, %v684
      %v701 = vmul.f32 %v517, %v685
      %v702 = vmul.f32 %v520, %v686
      %v703 = vmul.f32 %v525, %v687
      %v704 = vmul.f32 %v528, %v688
      %v705 = vmul.f32 %v533, %v689
      %v706 = vmul.f32 %v536, %v690
      %v707 = vmul.f32 %v541, %v691
      %v708 = vmul.f32 %v544, %v692
      %v709 = vmul.f32 %v549, %v693
      %v710 = vmul.f32 %v552, %v694
      %v711 = vmul.f32 %v557, %v695
      %v712 = vmul.f32 %v560, %v696
      %v713 = vmul.f32 %v565, %v697
      %v714 = vmul.f32 %v568, %v698
      %v715 = vpack.c.bf16 %v700, %v699
      %v716 = vpack.c.bf16 %v702, %v701
      %v717 = vpack.c.bf16 %v704, %v703
      %v718 = vpack.c.bf16 %v706, %v705
      %v719 = vpack.c.bf16 %v708, %v707
      %v720 = vpack.c.bf16 %v710, %v709
      %v721 = vpack.c.bf16 %v712, %v711
      %v722 = vpack.c.bf16 %v714, %v713
      %v723 = vld [vmem:[#allocation5] sm:$0xf]
      %v724 = vld [vmem:[#allocation5 + $0x4] sm:$0xf]
      %v725 = vld [vmem:[#allocation5 + $0x8] sm:$0xf]
      %v726 = vld [vmem:[#allocation5 + $0xc] sm:$0xf]
      %v727 = vld [vmem:[#allocation5 + $0x10] sm:$0xf]
      %v728 = vld [vmem:[#allocation5 + $0x14] sm:$0xf]
      %v729 = vld [vmem:[#allocation5 + $0x18] sm:$0xf]
      %v730 = vld [vmem:[#allocation5 + $0x1c] sm:$0xf]
      %v731 = vld [vmem:[#allocation5 + $0x20] sm:$0xf]
      %v732 = vld [vmem:[#allocation5 + $0x24] sm:$0xf]
      %v733 = vld [vmem:[#allocation5 + $0x28] sm:$0xf]
      %v734 = vld [vmem:[#allocation5 + $0x2c] sm:$0xf]
      %v735 = vld [vmem:[#allocation5 + $0x30] sm:$0xf]
      %v736 = vld [vmem:[#allocation5 + $0x34] sm:$0xf]
      %v737 = vld [vmem:[#allocation5 + $0x38] sm:$0xf]
      %v738 = vld [vmem:[#allocation5 + $0x3c] sm:$0xf]
      %v739 = vld [vmem:[%s6] sm:$0x1]
      %v741 = vlaneseq
      %v742 = vshrl.u32 %v741, 7
      %v743 = vsub.s32 0, %v742
      %v744 = vrot.slane %v739, %v743
      %v762 = vunpack.c.l.b16 %v723
      %v763 = vunpack.c.l.b16 %v724
      %v764 = vunpack.c.l.b16 %v725
      %v765 = vunpack.c.l.b16 %v726
      %v766 = vunpack.c.l.b16 %v727
      %v767 = vunpack.c.l.b16 %v728
      %v768 = vunpack.c.l.b16 %v729
      %v769 = vunpack.c.l.b16 %v730
      %v770 = vunpack.c.l.b16 %v731
      %v771 = vunpack.c.l.b16 %v732
      %v772 = vunpack.c.l.b16 %v733
      %v773 = vunpack.c.l.b16 %v734
      %v774 = vunpack.c.l.b16 %v735
      %v775 = vunpack.c.l.b16 %v736
      %v776 = vunpack.c.l.b16 %v737
      %v777 = vunpack.c.l.b16 %v738
      %v778 = vpack.c.b16 %v763, %v762
      %v779 = vpack.c.b16 %v765, %v764
      %v780 = vpack.c.b16 %v767, %v766
      %v781 = vpack.c.b16 %v769, %v768
      %v782 = vpack.c.b16 %v771, %v770
      %v783 = vpack.c.b16 %v773, %v772
      %v784 = vpack.c.b16 %v775, %v774
      %v785 = vpack.c.b16 %v777, %v776
      %794 = vmatprep.subr.bf16.mxu0 0
      %795 = vmatpush1.bf16.msra.mxu0 %v785
      %796 = vmatprep.subr.bf16.mxu0 0
      %797 = vmatpush1.bf16.msra.mxu0 %v784
      %798 = vmatprep.subr.bf16.mxu0 0
      %799 = vmatpush1.bf16.msra.mxu0 %v783
      %800 = vmatprep.subr.bf16.mxu0 0
      %801 = vmatpush1.bf16.msra.mxu0 %v782
      %802 = vmatprep.subr.bf16.mxu0 0
      %803 = vmatpush1.bf16.msra.mxu0 %v781
      %804 = vmatprep.subr.bf16.mxu0 0
      %805 = vmatpush1.bf16.msra.mxu0 %v780
      %806 = vmatprep.subr.bf16.mxu0 0
      %807 = vmatpush1.bf16.msra.mxu0 %v779
      %808 = vmatprep.subr.bf16.mxu0 0
      %809 = vmatpush1.bf16.msra.mxu0 %v778
      %810 = vmatprep.subr.bf16.mxu0 0
      %811 = vmatpush2.bf16.msra.mxu0 0
      %812 = vmatprep.subr.bf16.mxu0 0
      %813 = vmatpush2.bf16.msra.mxu0 0
      %814 = vmatprep.subr.bf16.mxu0 0
      %815 = vmatpush2.bf16.msra.mxu0 0
      %816 = vmatprep.subr.bf16.mxu0 0
      %817 = vmatpush2.bf16.msra.mxu0 0
      %818 = vmatprep.subr.bf16.mxu0 0
      %819 = vmatpush2.bf16.msra.mxu0 0
      %820 = vmatprep.subr.bf16.mxu0 0
      %821 = vmatpush2.bf16.msra.mxu0 0
      %822 = vmatprep.subr.bf16.mxu0 0
      %823 = vmatpush2.bf16.msra.mxu0 0
      %824 = vmatprep.subr.bf16.mxu0 0
      %825 = vmatpush2.bf16.msra.mxu0 0
      %826 = vmatprep.mubr.bf16.mxu0 0
      %827 = vmatmul.mubr.bf16.gmra.mxu0 %v715
      %v828 = vpop.f32.mrf.mxu0
      %v829 = vadd.f32 %v744, %v828
      %v830 = vpop.f32.mrf.mxu0
      %v831 = vpop.f32.mrf.mxu0
      %v832 = vadd.f32 %v744, %v831
      %v833 = vpop.f32.mrf.mxu0
      %834 = vmatprep.mubr.bf16.mxu0 0
      %835 = vmatmul.mubr.bf16.gmra.mxu0 %v716
      %v836 = vpop.f32.mrf.mxu0
      %v837 = vadd.f32 %v744, %v836
      %v838 = vpop.f32.mrf.mxu0
      %v839 = vpop.f32.mrf.mxu0
      %v840 = vadd.f32 %v744, %v839
      %v841 = vpop.f32.mrf.mxu0
      %842 = vmatprep.mubr.bf16.mxu0 0
      %843 = vmatmul.mubr.bf16.gmra.mxu0 %v717
      %v844 = vpop.f32.mrf.mxu0
      %v845 = vadd.f32 %v744, %v844
      %v846 = vpop.f32.mrf.mxu0
      %v847 = vpop.f32.mrf.mxu0
      %v848 = vadd.f32 %v744, %v847
      %v849 = vpop.f32.mrf.mxu0
      %850 = vmatprep.mubr.bf16.mxu0 0
      %851 = vmatmul.mubr.bf16.gmra.mxu0 %v718
      %v852 = vpop.f32.mrf.mxu0
      %v853 = vadd.f32 %v744, %v852
      %v854 = vpop.f32.mrf.mxu0
      %v855 = vpop.f32.mrf.mxu0
      %v856 = vadd.f32 %v744, %v855
      %v857 = vpop.f32.mrf.mxu0
      %858 = vmatprep.mubr.bf16.mxu0 0
      %859 = vmatmul.mubr.bf16.gmra.mxu0 %v719
      %v860 = vpop.f32.mrf.mxu0
      %v861 = vadd.f32 %v744, %v860
      %v862 = vpop.f32.mrf.mxu0
      %v863 = vpop.f32.mrf.mxu0
      %v864 = vadd.f32 %v744, %v863
      %v865 = vpop.f32.mrf.mxu0
      %866 = vmatprep.mubr.bf16.mxu0 0
      %867 = vmatmul.mubr.bf16.gmra.mxu0 %v720
      %v868 = vpop.f32.mrf.mxu0
      %v869 = vadd.f32 %v744, %v868
      %v870 = vpop.f32.mrf.mxu0
      %v871 = vpop.f32.mrf.mxu0
      %v872 = vadd.f32 %v744, %v871
      %v873 = vpop.f32.mrf.mxu0
      %874 = vmatprep.mubr.bf16.mxu0 0
      %875 = vmatmul.mubr.bf16.gmra.mxu0 %v721
      %v876 = vpop.f32.mrf.mxu0
      %v877 = vadd.f32 %v744, %v876
      %v878 = vpop.f32.mrf.mxu0
      %v879 = vpop.f32.mrf.mxu0
      %v880 = vadd.f32 %v744, %v879
      %v881 = vpop.f32.mrf.mxu0
      %882 = vmatprep.mubr.bf16.mxu0 0
      %883 = vmatmul.mubr.bf16.gmra.mxu0 %v722
      %v884 = vpop.f32.mrf.mxu0
      %v885 = vadd.f32 %v744, %v884
      %v886 = vpop.f32.mrf.mxu0
      %v887 = vpop.f32.mrf.mxu0
      %v888 = vadd.f32 %v744, %v887
      %v889 = vpop.f32.mrf.mxu0
      %890 = vdwg.mxu0
      %891 = vst [vmem:[%s7] sm:$0xff] %v829
      %892 = vst [vmem:[%s7 + $0x8] sm:$0xff] %v832
      %893 = vst [vmem:[%s7 + $0x10] sm:$0xff] %v837
      %894 = vst [vmem:[%s7 + $0x18] sm:$0xff] %v840
      %895 = vst [vmem:[%s7 + $0x20] sm:$0xff] %v845
      %896 = vst [vmem:[%s7 + $0x28] sm:$0xff] %v848
      %897 = vst [vmem:[%s7 + $0x30] sm:$0xff] %v853
      %898 = vst [vmem:[%s7 + $0x38] sm:$0xff] %v856
      %899 = vst [vmem:[%s7 + $0x40] sm:$0xff] %v861
      %900 = vst [vmem:[%s7 + $0x48] sm:$0xff] %v864
      %901 = vst [vmem:[%s7 + $0x50] sm:$0xff] %v869
      %902 = vst [vmem:[%s7 + $0x58] sm:$0xff] %v872
      %903 = vst [vmem:[%s7 + $0x60] sm:$0xff] %v877
      %904 = vst [vmem:[%s7 + $0x68] sm:$0xff] %v880
      %905 = vst [vmem:[%s7 + $0x70] sm:$0xff] %v885
      %906 = vst [vmem:[%s7 + $0x78] sm:$0xff] %v888
    $region45: #{st_backbone_forward.1} parent=1 // pred_fallthru
      _
    // Predicated region
    $region46: #{st_backbone_forward.1} parent=1 // pred_check
      _
    $region47: #{st_backbone_forward.1} parent=1 // pred_check_branch
      %908 = sbr.rel (0) target = $region49
    $region48: #{st_backbone_forward.1} parent=1 // pred_region
      _
    $region49: #{st_backbone_forward.1} parent=1 // pred_fallthru
      _
    // Predicated region
    $region50: #{st_backbone_forward.1} parent=1 // pred_check
      _
    $region51: #{st_backbone_forward.1} parent=1 // pred_check_branch
      %910 = sbr.rel (0) target = $region53
    $region52: #{st_backbone_forward.1} parent=1 // pred_region
      _
    $region53: #{st_backbone_forward.1} parent=1 // pred_fallthru
      _
    %911 = vsyncpa [#allocation4], 1
    %912 = vsyncpa [#allocation6], 1

</llo_original>
